<compile_context>
chip_gen: v7x
topology: tpu7x:2x2x1
jax: 0.10.0
libtpu: 0.0.40
codegen_flags: <defaults>
</compile_context>

<pallas_src>
import math

import numpy as np
import jax
import jax.numpy as jnp
from jax.experimental import pallas as pl
from jax.experimental.pallas import tpu as pltpu

OUT_LANES = 128   # lane width of the per-grid-step output block


# --------------------------------------------------------------------------
# Pallas kernel: `block_b` SCCNet samples per grid step.
#
# Ref shapes (Bblk = samples per block, BT = Bblk*T, LP = Bblk*Tp_pad):
#   x_ref    (K*C, BT)   bf16  im2col slab: row k*C+c, col b*T+t = x[b, c, t+k]
#   wc_ref   (G, K*C)    bf16  folded (spatio-temporal conv o BN1 o spatial conv)
#   bc_ref   (G, 1)      f32   folded bias
#   s2_ref   (G, 1)      f32   BN2 scale * 1/sqrt(pool_win)
#   sh2_ref  (G, 1)      f32   BN2 shift * 1/sqrt(pool_win)
#   pool_ref (BT, LP)    bf16  block-diagonal 0/1 average-pool window matrix
#   wf_ref   (O, G, LP)  f32   final-layer weight, zero-padded + tiled per sample
#   seg_ref  (LP, 128)   f32   segment-sum matrix: column b sums sample b's cols
#   bf_ref   (O, 1)      f32   final-layer bias
#   out_ref  (O, 128)    f32   logits for the Bblk samples (cols >= Bblk unused)
# --------------------------------------------------------------------------
def sccnet_kernel(x_ref, wc_ref, bc_ref, s2_ref, sh2_ref, pool_ref,
                  wf_ref, seg_ref, bf_ref, out_ref):
    # 1+2. spatial conv + BN1 + spatio-temporal conv, folded into one
    #      lane-dense MXU matmul over the im2col slab (f32 accumulation).
    z = jnp.dot(wc_ref[...], x_ref[...],
                preferred_element_type=jnp.float32) + bc_ref[...]       # (G, BT)

    # 3. BN2 (eval, folded to scale/shift; 1/sqrt(W) pre-folded) + square. f32 VPU.
    z = z * s2_ref[...] + sh2_ref[...]
    z = z * z
    # dropout: identity in eval mode.

    # 4. AvgPool2d((1, W), stride (1, K)) for all samples at once: one matmul
    #    against the block-diagonal 0/1 window matrix. Columns of z whose
    #    per-sample time index is >= T-K+1 hold zero-padded tails; the pool
    #    matrix never reads them anyway.
    p = jnp.dot(z.astype(jnp.bfloat16), pool_ref[...],
                preferred_element_type=jnp.float32)                     # (G, LP)

    # 5. LogActivation (f32, EUP). Zero-padded pool columns give log(1e-6),
    #    which is multiplied by zero weights below.
    logp = jnp.log(p + 1e-6)

    # 6. final Linear for all Bblk samples: per-class weighted sum over the
    #    spatial-filter (sublane) axis, then a segment-sum matmul collapses the
    #    per-sample pooled columns onto one lane per sample -> one lane-dense
    #    (O, 128) store per grid step.
    n_out = wf_ref.shape[0]
    rows = [jnp.sum(wf_ref[o] * logp, axis=0, keepdims=True)
            for o in range(n_out)]                                      # O x (1, LP)
    colsum = jnp.concatenate(rows, axis=0)                              # (O, LP)
    out_ref[...] = jnp.dot(colsum, seg_ref[...],
                           preferred_element_type=jnp.float32) + bf_ref[...]


# --------------------------------------------------------------------------
# Wrapper: operand preparation (layout plumbing) + pallas_call
# --------------------------------------------------------------------------
def sccnet_forward(x, w1_eff, b1_eff, w2_kgf, s2, sh2, wf3, bf, *,
                   pool_win, pool_stride, block_b=8):
    """SCCNet forward (eval mode) via one Pallas TPU kernel.

    x       : (B, C, T) f32
    w1_eff  : (F, C)     spatial conv weight with eval-mode BN1 folded in
    b1_eff  : (F, 1)     spatial conv bias with eval-mode BN1 folded in
    w2_kgf  : (K, G, F)  spatio-temporal conv weight (kernel index major)
    s2, sh2 : (G, 1)     eval-mode BN2 folded to scale / shift
    wf3     : (O, G, Tp) final linear weight ((G, Tp) row-major flatten order)
    bf      : (1, O)     final linear bias
    """
    B, C, T = x.shape
    K, G, _ = w2_kgf.shape
    O, _, Tp = wf3.shape
    T2 = T - K + 1
    W = pool_win
    assert Tp == (T2 - W) // pool_stride + 1

    # ---- batch blocking -----------------------------------------------------
    # block_b is rounded up so block_b * T is a multiple of 128 (lane-dense
    # im2col slab) and capped at 128 (one output lane per sample in the block).
    need = 128 // math.gcd(T, 128)
    Bblk = max(1, min(block_b, B))
    Bblk = ((Bblk + need - 1) // need) * need
    assert Bblk <= OUT_LANES, "block_b * padding requirement exceeds 128 lanes"
    nblk = -(-B // Bblk)
    Bp = nblk * Bblk
    if Bp != B:
        x = jnp.concatenate([x, jnp.zeros((Bp - B, C, T), x.dtype)], axis=0)
    BT = Bblk * T
    assert BT % 128 == 0

    # ---- im2col slab: row k*C+c, column b*T+t  ->  x[b, c, t+k] --------------
    shifts = []
    for k in range(K):
        xs = jnp.pad(x[:, :, k:], ((0, 0), (0, 0), (0, k)))             # (Bp, C, T)
        shifts.append(jnp.transpose(xs, (1, 0, 2)).reshape(1, C, Bp * T))
    x_stack = jnp.concatenate(shifts, axis=0).reshape(K * C, Bp * T)
    x_stack = x_stack.astype(jnp.bfloat16)

    # ---- fold spatial conv + BN1 into the spatio-temporal conv (exact) -------
    hi = jax.lax.Precision.HIGHEST
    wc = jnp.einsum('kgf,fc->gkc', w2_kgf, w1_eff, precision=hi)
    wc = wc.reshape(G, K * C).astype(jnp.bfloat16)                      # (G, K*C)
    bc = jnp.einsum('kgf,fx->gx', w2_kgf, b1_eff, precision=hi)
    bc = bc.astype(jnp.float32)                                         # (G, 1)

    # ---- BN2 scale/shift with 1/sqrt(W) folded in (0/1 pool matrix stays exact)
    inv_sqrt_w = 1.0 / math.sqrt(W)
    s2e = (s2 * inv_sqrt_w).astype(jnp.float32)
    sh2e = (sh2 * inv_sqrt_w).astype(jnp.float32)

    # ---- pooled lane dim, zero-padded to a multiple of 128 when possible -----
    lane = Bblk * Tp
    lane_pad = ((lane + 127) // 128) * 128
    Tp_pad = lane_pad // Bblk if lane_pad % Bblk == 0 else Tp
    LP = Bblk * Tp_pad

    # block-diagonal 0/1 pooling matrix (per-sample windows)
    base = np.zeros((T, Tp_pad), np.float32)
    for j in range(Tp):
        base[j * pool_stride:j * pool_stride + W, j] = 1.0
    pool_np = np.zeros((BT, LP), np.float32)
    for b in range(Bblk):
        pool_np[b * T:(b + 1) * T, b * Tp_pad:(b + 1) * Tp_pad] = base
    pool = jnp.asarray(pool_np, jnp.bfloat16)

    # final-layer weight, zero-padded in Tp and tiled once per sample in block
    wf_pad = jnp.pad(jnp.asarray(wf3, jnp.float32),
                     ((0, 0), (0, 0), (0, Tp_pad - Tp)))
    wf_tiled = jnp.tile(wf_pad, (1, 1, Bblk))                           # (O, G, LP)

    # segment-sum matrix: column b collects the Tp_pad pooled columns of sample b
    seg_np = np.zeros((LP, OUT_LANES), np.float32)
    for b in range(Bblk):
        seg_np[b * Tp_pad:(b + 1) * Tp_pad, b] = 1.0
    seg = jnp.asarray(seg_np)

    bf2 = jnp.asarray(bf, jnp.float32).reshape(O, 1)

    # ---- advisory cost estimate ----------------------------------------------
    flops = nblk * 2 * (G * (K * C) * BT + G * BT * LP
                        + O * G * LP + O * LP * OUT_LANES)
    transcendentals = nblk * G * LP
    bytes_accessed = (x_stack.size * 2 + pool.size * 2 + wc.size * 2
                      + (bc.size + s2e.size + sh2e.size + wf_tiled.size
                         + seg.size + bf2.size) * 4
                      + O * nblk * OUT_LANES * 4)

    out = pl.pallas_call(
        sccnet_kernel,
        out_shape=jax.ShapeDtypeStruct((O, nblk * OUT_LANES), jnp.float32),
        grid_spec=pltpu.PrefetchScalarGridSpec(
            num_scalar_prefetch=0,
            grid=(nblk,),
            in_specs=[
                pl.BlockSpec((K * C, BT), lambda i: (0, i)),       # im2col x slab
                pl.BlockSpec((G, K * C), lambda i: (0, 0)),        # folded conv weight
                pl.BlockSpec((G, 1), lambda i: (0, 0)),            # folded conv bias
                pl.BlockSpec((G, 1), lambda i: (0, 0)),            # BN2 scale / sqrt(W)
                pl.BlockSpec((G, 1), lambda i: (0, 0)),            # BN2 shift / sqrt(W)
                pl.BlockSpec((BT, LP), lambda i: (0, 0)),          # pooling matrix
                pl.BlockSpec((O, G, LP), lambda i: (0, 0, 0)),     # tiled final weight
                pl.BlockSpec((LP, OUT_LANES), lambda i: (0, 0)),   # segment-sum matrix
                pl.BlockSpec((O, 1), lambda i: (0, 0)),            # final bias
            ],
            out_specs=pl.BlockSpec((O, OUT_LANES), lambda i: (0, i)),
        ),
        compiler_params=pltpu.CompilerParams(
            dimension_semantics=("parallel",)),
        cost_estimate=pl.CostEstimate(flops=int(flops),
                                      transcendentals=int(transcendentals),
                                      bytes_accessed=int(bytes_accessed)),
    )(x_stack, wc, bc, s2e, sh2e, pool, wf_tiled, seg, bf2)

    # (O, nblk*128) -> (B, O)
    out = out.reshape(O, nblk, OUT_LANES)[:, :, :Bblk]
    out = jnp.transpose(out, (1, 2, 0)).reshape(Bp, O)
    return out[:B]


# --------------------------------------------------------------------------
# Pure-JAX reference (eval-mode SCCNet semantics, f32 throughout)
# --------------------------------------------------------------------------
def sccnet_ref(x, w1_eff, b1_eff, w2_kgf, s2, sh2, wf3, bf, *,
               pool_win, pool_stride):
    hi = jax.lax.Precision.HIGHEST
    K, G, _ = w2_kgf.shape
    B, C, T = x.shape
    T2 = T - K + 1
    y = jnp.einsum('fc,bct->bft', w1_eff, x, precision=hi) + b1_eff[None]
    z = jnp.zeros((B, G, T2), jnp.float32)
    for k in range(K):
        z = z + jnp.einsum('gf,bft->bgt', w2_kgf[k], y[:, :, k:k + T2],
                           precision=hi)
    z = z * s2[None] + sh2[None]
    z = z * z
    Tp = (T2 - pool_win) // pool_stride + 1
    p = jnp.stack(
        [z[:, :, j * pool_stride:j * pool_stride + pool_win].mean(axis=-1)
         for j in range(Tp)], axis=-1)                               # (B, G, Tp)
    logp = jnp.log(p + 1e-6)
    return jnp.einsum('bgj,ogj->bo', logp, wf3, precision=hi) + bf


# --------------------------------------------------------------------------
if __name__ == "__main__":
    # Small-but-consistent SCCNet hyperparameters
    B = 16           # batch: 2 "parallel" grid steps of 8 samples each
    C = 8            # n_chans
    T = 64           # n_times
    SFREQ = 40.0
    F = 22           # n_spatial_filters
    G = 20           # n_spatial_filters_smooth
    O = 4            # n_outputs
    K = int(math.floor(SFREQ * 0.1))          # samples_100ms = 4
    POOL_WIN = int(SFREQ / 2)                 # AvgPool kernel width = 20
    POOL_STRIDE = K                           # AvgPool stride = 4
    T2 = T - K + 1                            # 61
    TP = (T2 - POOL_WIN) // POOL_STRIDE + 1   # 11
    NUM_FEAT = G * TP                         # 220
    EPS_BN = 1e-5

    key = jax.random.PRNGKey(0)
    ks = jax.random.split(key, 16)

    # input
    x = jax.random.normal(ks[0], (B, C, T), jnp.float32)

    # spatial conv (F,1,C,1) -> (F,C) + bias, with eval-mode BN1 folded in
    w1 = jax.random.normal(ks[1], (F, C), jnp.float32) / math.sqrt(C)
    b1 = 0.01 * jax.random.normal(ks[2], (F,), jnp.float32)
    g1 = 1.0 + 0.1 * jax.random.normal(ks[3], (F,), jnp.float32)
    be1 = 0.1 * jax.random.normal(ks[4], (F,), jnp.float32)
    m1 = 0.1 * jax.random.normal(ks[5], (F,), jnp.float32)
    v1 = 1.0 + 0.1 * jnp.abs(jax.random.normal(ks[6], (F,), jnp.float32))
    scale1 = g1 / jnp.sqrt(v1 + EPS_BN)
    w1_eff = w1 * scale1[:, None]
    b1_eff = ((b1 - m1) * scale1 + be1)[:, None]                      # (F, 1)

    # spatio-temporal conv (G,1,F,K) -> stored as (K,G,F); no bias
    w2 = jax.random.normal(ks[7], (G, F, K), jnp.float32) / math.sqrt(F * K)
    w2_kgf = jnp.transpose(w2, (2, 0, 1))                             # (K, G, F)

    # BN2 (eval) folded to scale / shift
    g2 = 1.0 + 0.1 * jax.random.normal(ks[8], (G,), jnp.float32)
    be2 = 0.1 * jax.random.normal(ks[9], (G,), jnp.float32)
    m2 = 0.1 * jax.random.normal(ks[10], (G,), jnp.float32)
    v2 = 1.0 + 0.1 * jnp.abs(jax.random.normal(ks[11], (G,), jnp.float32))
    s2 = (g2 / jnp.sqrt(v2 + EPS_BN))[:, None]                        # (G, 1)
    sh2 = (be2 - m2 * (g2 / jnp.sqrt(v2 + EPS_BN)))[:, None]          # (G, 1)

    # final linear: (O, NUM_FEAT), flatten order (G, TP) row-major
    wf = jax.random.normal(ks[12], (O, NUM_FEAT), jnp.float32) / math.sqrt(NUM_FEAT)
    wf3 = wf.reshape(O, G, TP)
    bf = 0.01 * jax.random.normal(ks[13], (1, O), jnp.float32)

    # TODO(synk): dropout is implemented as eval-mode identity; BatchNorm uses
    # eval-mode running statistics, folded into the adjacent linear ops.

    out = sccnet_forward(x, w1_eff, b1_eff, w2_kgf, s2, sh2, wf3, bf,
                         pool_win=POOL_WIN, pool_stride=POOL_STRIDE, block_b=8)
    out = jax.block_until_ready(out)

    ref = sccnet_ref(x, w1_eff, b1_eff, w2_kgf, s2, sh2, wf3, bf,
                     pool_win=POOL_WIN, pool_stride=POOL_STRIDE)

    assert out.shape == (B, O)
    assert bool(jnp.all(jnp.isfinite(out)))
    # bf16 MXU operands with f32 accumulation; stays well within 2e-2 of the
    # pure-f32 reference at these scales.
    err = float(jnp.max(jnp.abs(out - ref)))
    assert bool(jnp.allclose(out, ref, rtol=2e-2, atol=2e-2)), f"max |err| = {err}"

    print("KERNEL_OK")
</pallas_src>

<mosaic_0001>
module attributes {stable_mosaic.version = 11 : i64} {
  func.func @sccnet_kernel(%arg0: i32, %arg1: memref<32x512xbf16, #tpu.memory_space<vmem>>, %arg2: memref<20x32xbf16, #tpu.memory_space<vmem>>, %arg3: memref<20x1xf32, #tpu.memory_space<vmem>>, %arg4: memref<20x1xf32, #tpu.memory_space<vmem>>, %arg5: memref<20x1xf32, #tpu.memory_space<vmem>>, %arg6: memref<512x128xbf16, #tpu.memory_space<vmem>>, %arg7: memref<4x20x128xf32, #tpu.memory_space<vmem>>, %arg8: memref<128x128xf32, #tpu.memory_space<vmem>>, %arg9: memref<4x1xf32, #tpu.memory_space<vmem>>, %arg10: memref<4x128xf32, #tpu.memory_space<vmem>>) attributes {dimension_semantics = [#tpu.dimension_semantics<parallel>], iteration_bounds = array<i64: 2>, scalar_prefetch = 0 : i64, scratch_operands = 0 : i64, tpu.core_type = #tpu.core_type<tc>, window_params = [{transform_indices = @transform_0, window_bounds = array<i64: 32, 512>}, {pipeline_mode = #tpu.pipeline_mode<synchronous>, transform_indices = @transform_1, window_bounds = array<i64: 20, 32>}, {pipeline_mode = #tpu.pipeline_mode<synchronous>, transform_indices = @transform_2, window_bounds = array<i64: 20, 1>}, {pipeline_mode = #tpu.pipeline_mode<synchronous>, transform_indices = @transform_3, window_bounds = array<i64: 20, 1>}, {pipeline_mode = #tpu.pipeline_mode<synchronous>, transform_indices = @transform_4, window_bounds = array<i64: 20, 1>}, {pipeline_mode = #tpu.pipeline_mode<synchronous>, transform_indices = @transform_5, window_bounds = array<i64: 512, 128>}, {pipeline_mode = #tpu.pipeline_mode<synchronous>, transform_indices = @transform_6, window_bounds = array<i64: 4, 20, 128>}, {pipeline_mode = #tpu.pipeline_mode<synchronous>, transform_indices = @transform_7, window_bounds = array<i64: 128, 128>}, {pipeline_mode = #tpu.pipeline_mode<synchronous>, transform_indices = @transform_8, window_bounds = array<i64: 4, 1>}, {transform_indices = @transform_9, window_bounds = array<i64: 4, 128>}]} {
    %c0 = arith.constant 0 : index
    %c0_0 = arith.constant 0 : index
    %0 = vector.load %arg2[%c0, %c0_0] : memref<20x32xbf16, #tpu.memory_space<vmem>>, vector<20x32xbf16>
    %c0_1 = arith.constant 0 : index
    %c0_2 = arith.constant 0 : index
    %1 = vector.load %arg1[%c0_1, %c0_2] : memref<32x512xbf16, #tpu.memory_space<vmem>>, vector<32x512xbf16>
    %cst = arith.constant dense<0.000000e+00> : vector<20x512xf32>
    %2 = tpu.matmul %0, %1, %cst {dimension_numbers = #tpu.dot_dimension_numbers<[1], [0], [0], [1], [0, 0, 1, 1], [], []>} : vector<20x32xbf16>, vector<32x512xbf16>, vector<20x512xf32> -> vector<20x512xf32>
    %c0_3 = arith.constant 0 : index
    %c0_4 = arith.constant 0 : index
    %3 = vector.load %arg3[%c0_3, %c0_4] : memref<20x1xf32, #tpu.memory_space<vmem>>, vector<20x1xf32>
    %4 = vector.broadcast %3 : vector<20x1xf32> to vector<20x512xf32>
    %5 = arith.addf %2, %4 : vector<20x512xf32>
    %c0_5 = arith.constant 0 : index
    %c0_6 = arith.constant 0 : index
    %6 = vector.load %arg4[%c0_5, %c0_6] : memref<20x1xf32, #tpu.memory_space<vmem>>, vector<20x1xf32>
    %7 = vector.broadcast %6 : vector<20x1xf32> to vector<20x512xf32>
    %8 = arith.mulf %5, %7 : vector<20x512xf32>
    %c0_7 = arith.constant 0 : index
    %c0_8 = arith.constant 0 : index
    %9 = vector.load %arg5[%c0_7, %c0_8] : memref<20x1xf32, #tpu.memory_space<vmem>>, vector<20x1xf32>
    %10 = vector.broadcast %9 : vector<20x1xf32> to vector<20x512xf32>
    %11 = arith.addf %8, %10 : vector<20x512xf32>
    %12 = arith.mulf %11, %11 : vector<20x512xf32>
    %13 = arith.truncf %12 : vector<20x512xf32> to vector<20x512xbf16>
    %c0_9 = arith.constant 0 : index
    %c0_10 = arith.constant 0 : index
    %14 = vector.load %arg6[%c0_9, %c0_10] : memref<512x128xbf16, #tpu.memory_space<vmem>>, vector<512x128xbf16>
    %cst_11 = arith.constant dense<0.000000e+00> : vector<20x128xf32>
    %15 = tpu.matmul %13, %14, %cst_11 {dimension_numbers = #tpu.dot_dimension_numbers<[1], [0], [0], [1], [0, 0, 1, 1], [], []>} : vector<20x512xbf16>, vector<512x128xbf16>, vector<20x128xf32> -> vector<20x128xf32>
    %cst_12 = arith.constant 9.99999997E-7 : f32
    %16 = vector.broadcast %cst_12 : f32 to vector<20x128xf32>
    %17 = arith.addf %15, %16 : vector<20x128xf32>
    %18 = math.log %17 : vector<20x128xf32>
    %c0_13 = arith.constant 0 : index
    %c0_14 = arith.constant 0 : index
    %c0_15 = arith.constant 0 : index
    %19 = vector.load %arg7[%c0_13, %c0_14, %c0_15] : memref<4x20x128xf32, #tpu.memory_space<vmem>>, vector<1x20x128xf32>
    %20 = vector.shape_cast %19 : vector<1x20x128xf32> to vector<20x128xf32>
    %21 = arith.mulf %20, %18 : vector<20x128xf32>
    %cst_16 = arith.constant dense<0.000000e+00> : vector<128xf32>
    %22 = vector.multi_reduction <add>, %21, %cst_16 [0] : vector<20x128xf32> to vector<128xf32>
    %23 = vector.shape_cast %22 : vector<128xf32> to vector<1x128xf32>
    %c1 = arith.constant 1 : index
    %c0_17 = arith.constant 0 : index
    %c0_18 = arith.constant 0 : index
    %24 = vector.load %arg7[%c1, %c0_17, %c0_18] : memref<4x20x128xf32, #tpu.memory_space<vmem>>, vector<1x20x128xf32>
    %25 = vector.shape_cast %24 : vector<1x20x128xf32> to vector<20x128xf32>
    %26 = arith.mulf %25, %18 : vector<20x128xf32>
    %cst_19 = arith.constant dense<0.000000e+00> : vector<128xf32>
    %27 = vector.multi_reduction <add>, %26, %cst_19 [0] : vector<20x128xf32> to vector<128xf32>
    %28 = vector.shape_cast %27 : vector<128xf32> to vector<1x128xf32>
    %c2 = arith.constant 2 : index
    %c0_20 = arith.constant 0 : index
    %c0_21 = arith.constant 0 : index
    %29 = vector.load %arg7[%c2, %c0_20, %c0_21] : memref<4x20x128xf32, #tpu.memory_space<vmem>>, vector<1x20x128xf32>
    %30 = vector.shape_cast %29 : vector<1x20x128xf32> to vector<20x128xf32>
    %31 = arith.mulf %30, %18 : vector<20x128xf32>
    %cst_22 = arith.constant dense<0.000000e+00> : vector<128xf32>
    %32 = vector.multi_reduction <add>, %31, %cst_22 [0] : vector<20x128xf32> to vector<128xf32>
    %33 = vector.shape_cast %32 : vector<128xf32> to vector<1x128xf32>
    %c3 = arith.constant 3 : index
    %c0_23 = arith.constant 0 : index
    %c0_24 = arith.constant 0 : index
    %34 = vector.load %arg7[%c3, %c0_23, %c0_24] : memref<4x20x128xf32, #tpu.memory_space<vmem>>, vector<1x20x128xf32>
    %35 = vector.shape_cast %34 : vector<1x20x128xf32> to vector<20x128xf32>
    %36 = arith.mulf %35, %18 : vector<20x128xf32>
    %cst_25 = arith.constant dense<0.000000e+00> : vector<128xf32>
    %37 = vector.multi_reduction <add>, %36, %cst_25 [0] : vector<20x128xf32> to vector<128xf32>
    %38 = vector.shape_cast %37 : vector<128xf32> to vector<1x128xf32>
    %39 = tpu.concatenate %23, %28, %33, %38 in 0 : vector<1x128xf32>, vector<1x128xf32>, vector<1x128xf32>, vector<1x128xf32> -> vector<4x128xf32>
    %c0_26 = arith.constant 0 : index
    %c0_27 = arith.constant 0 : index
    %40 = vector.load %arg8[%c0_26, %c0_27] : memref<128x128xf32, #tpu.memory_space<vmem>>, vector<128x128xf32>
    %cst_28 = arith.constant dense<0.000000e+00> : vector<4x128xf32>
    %41 = tpu.matmul %39, %40, %cst_28 {dimension_numbers = #tpu.dot_dimension_numbers<[1], [0], [0], [1], [0, 0, 1, 1], [], []>} : vector<4x128xf32>, vector<128x128xf32>, vector<4x128xf32> -> vector<4x128xf32>
    %c0_29 = arith.constant 0 : index
    %c0_30 = arith.constant 0 : index
    %42 = vector.load %arg9[%c0_29, %c0_30] : memref<4x1xf32, #tpu.memory_space<vmem>>, vector<4x1xf32>
    %43 = vector.broadcast %42 : vector<4x1xf32> to vector<4x128xf32>
    %44 = arith.addf %41, %43 : vector<4x128xf32>
    %c0_31 = arith.constant 0 : index
    %c0_32 = arith.constant 0 : index
    %45 = vector.load %arg10[%c0_31, %c0_32] : memref<4x128xf32, #tpu.memory_space<vmem>>, vector<4x128xf32>
    tpu.vector_store %arg10[%c0_31, %c0_32], %44 {strides = array<i32>} : memref<4x128xf32, #tpu.memory_space<vmem>>, vector<4x128xf32>,
    return
  }
  func.func @transform_0(%arg0: i32) -> (i32, i32) {
    %c0_i32 = arith.constant 0 : i32
    %c0_i32_0 = arith.constant 0 : i32
    return %c0_i32, %arg0 : i32, i32
  }
  func.func @transform_1(%arg0: i32) -> (i32, i32) {
    %c0_i32 = arith.constant 0 : i32
    %c0_i32_0 = arith.constant 0 : i32
    %c0_i32_1 = arith.constant 0 : i32
    return %c0_i32, %c0_i32_0 : i32, i32
  }
  func.func @transform_2(%arg0: i32) -> (i32, i32) {
    %c0_i32 = arith.constant 0 : i32
    %c0_i32_0 = arith.constant 0 : i32
    %c0_i32_1 = arith.constant 0 : i32
    return %c0_i32, %c0_i32_0 : i32, i32
  }
  func.func @transform_3(%arg0: i32) -> (i32, i32) {
    %c0_i32 = arith.constant 0 : i32
    %c0_i32_0 = arith.constant 0 : i32
    %c0_i32_1 = arith.constant 0 : i32
    return %c0_i32, %c0_i32_0 : i32, i32
  }
  func.func @transform_4(%arg0: i32) -> (i32, i32) {
    %c0_i32 = arith.constant 0 : i32
    %c0_i32_0 = arith.constant 0 : i32
    %c0_i32_1 = arith.constant 0 : i32
    return %c0_i32, %c0_i32_0 : i32, i32
  }
  func.func @transform_5(%arg0: i32) -> (i32, i32) {
    %c0_i32 = arith.constant 0 : i32
    %c0_i32_0 = arith.constant 0 : i32
    %c0_i32_1 = arith.constant 0 : i32
    return %c0_i32, %c0_i32_0 : i32, i32
  }
  func.func @transform_6(%arg0: i32) -> (i32, i32, i32) {
    %c0_i32 = arith.constant 0 : i32
    %c0_i32_0 = arith.constant 0 : i32
    %c0_i32_1 = arith.constant 0 : i32
    %c0_i32_2 = arith.constant 0 : i32
    return %c0_i32, %c0_i32_0, %c0_i32_1 : i32, i32, i32
  }
  func.func @transform_7(%arg0: i32) -> (i32, i32) {
    %c0_i32 = arith.constant 0 : i32
    %c0_i32_0 = arith.constant 0 : i32
    %c0_i32_1 = arith.constant 0 : i32
    return %c0_i32, %c0_i32_0 : i32, i32
  }
  func.func @transform_8(%arg0: i32) -> (i32, i32) {
    %c0_i32 = arith.constant 0 : i32
    %c0_i32_0 = arith.constant 0 : i32
    %c0_i32_1 = arith.constant 0 : i32
    return %c0_i32, %c0_i32_0 : i32, i32
  }
  func.func @transform_9(%arg0: i32) -> (i32, i32) {
    %c0_i32 = arith.constant 0 : i32
    %c0_i32_0 = arith.constant 0 : i32
    return %c0_i32, %arg0 : i32, i32
  }
}

</mosaic_0001>

<llo_original>
// kernel: tpu_custom_call.1
$region0: #{tpu_custom_call.1}
  #allocation0 [shape = 'u32[]', space=smem, size = 0x4, offset = 0x4, fixed_abs, tag = 'smem constant byte address 0x4 - core index']
  #allocation1 [shape = 'u32[144,128]{1,0:T(1,128)}', space=vmem, size = 0x12000, scoped, tag = 'internal scratch']
  %s0 = inlined_call_operand.hbm [shape: bf16[32,1024], index: 0, kind: input, shape index: {}]
  %s1 = inlined_call_operand.vmem [shape: bf16[20,32], index: 1, kind: input, shape index: {}]
  %s2 = inlined_call_operand.vmem [shape: f32[20,1], index: 2, kind: input, shape index: {}]
  %s3 = inlined_call_operand.vmem [shape: f32[20,1], index: 3, kind: input, shape index: {}]
  %s4 = inlined_call_operand.vmem [shape: f32[20,1], index: 4, kind: input, shape index: {}]
  %s5 = inlined_call_operand.vmem [shape: bf16[512,128], index: 5, kind: input, shape index: {}]
  %s6 = inlined_call_operand.vmem [shape: f32[4,20,128], index: 6, kind: input, shape index: {}]
  %s7 = inlined_call_operand.hbm [shape: f32[128,128], index: 7, kind: input, shape index: {}]
  %s8 = inlined_call_operand.vmem [shape: f32[4,1], index: 8, kind: input, shape index: {}]
  %s9 = inlined_call_operand.hbm [shape: f32[4,256], index: 9, kind: output, shape index: {}]
  %s10 = sld [smem:[#allocation0]]
  $region77: #{tpu_custom_call.1} parent=0
    _
  %s12 = ssub.s32 1, %s10
  %s13 = scalar_select 0, %s12, %s10
  $region1: #{tpu_custom_call.1} parent=0
    #allocation2 [shape = 'u8[65536]{0}', space=vmem, size = 0x10000, scoped, tag = 'input window, operand 0']
    #allocation3 [shape = 's32[2]{0}', space=sflag, size = 0x8, scoped, tag = 'scoped memory for tpu_custom_call.1']
    #allocation4 [shape = 's32[2]{0}', space=sflag, size = 0x8, scoped, tag = 'scoped memory for tpu_custom_call.1']
    #allocation5 [shape = 'u8[65536]{0}', space=vmem, size = 0x10000, scoped, tag = 'input window, operand 7, single buffered']
    #allocation6 [shape = 's32[1]{0}', space=sflag, size = 0x4, scoped, tag = 'scoped memory for tpu_custom_call.1']
    #allocation7 [shape = 'u8[4096]{0}', space=vmem, size = 0x1000, scoped, tag = 'output window, operand 0']
    %14 = vsyncpa [#allocation3], 0
    %s15 = scalar_lea.sflag [#allocation3], 1
    %16 = vsyncpa %s15, 0
    %17 = vsyncpa [#allocation6], 0
    %18 = vsyncpa [#allocation4], 0
    %s19 = scalar_lea.sflag [#allocation4], 1
    %20 = vsyncpa %s19, 0
    loop: start=0, step=1, limit=4
    $region2: #{tpu_custom_call.1} parent=1 // loop_pre_header
      _
    $region3: #{tpu_custom_call.1} parent=1 // loop_header
      %s22 = sphi 0, %s26
      %p23 = scmp.ge.s32.totalorder %s22, 4
      %s32 = sphi 0, %s34
      %s35 = sphi 0, %s32
      %s36 = sphi 0, %s35
      %s52 = sphi 0, %s36
      %s56 = sphi 0, %s56
      %s58 = sphi 0, %s56
      %s59 = sphi 0, %s58
      %s73 = sphi 0, %s59
      %s77 = sphi 0, %s77
      %s79 = sphi 0, %s77
      %s80 = sphi 0, %s79
      %s94 = sphi 0, %s80
      %s98 = sphi 0, %s98
      %s100 = sphi 0, %s98
      %s101 = sphi 0, %s100
      %s115 = sphi 0, %s101
      %s119 = sphi 0, %s119
      %s121 = sphi 0, %s119
      %s122 = sphi 0, %s121
      %s136 = sphi 0, %s122
      %s140 = sphi 0, %s140
      %s142 = sphi 0, %s140
      %s143 = sphi 0, %s142
      %s157 = sphi 0, %s143
      %s161 = sphi 0, %s161
      %s163 = sphi 0, %s161
      %s164 = sphi 0, %s163
      %s178 = sphi 0, %s164
      %s182 = sphi 0, %s182
      %s184 = sphi 0, %s182
      %s185 = sphi 0, %s184
      %s199 = sphi 0, %s185
      %s203 = sphi 0, %s203
      %s205 = sphi 0, %s203
      %s206 = sphi 0, %s205
      %s220 = sphi 0, %s206
      %s226 = sphi 0, %s228
      %s229 = sphi 0, %s226
      %s230 = sphi 0, %s229
      %s246 = sphi 0, %s230
    $region4: #{tpu_custom_call.1} parent=1 // loop_header_branch
      %25 = sbr.rel (%p23) target = $region8
    $region5: #{tpu_custom_call.1} parent=1 // loop_body
      %s27 = ssub.s32 %s22, 1
      %s28 = ssub.s32 %s22, 2
      %s29 = sadd.s32 %s22, 1
      %s30 = ssub.s32 %s22, %s29
      %p31 = scmp.eq.s32.totalorder %s30, 0
      %s33 = sadd.s32 %s32, 1
      %s34 = scalar_select %p31, %s32, %s33
      %p37 = pneg %p31
      %p38 = scmp.eq.s32.totalorder %s22, 1
      %p39 = por %p37, %p38
      %p40 = scmp.ne.s32.totalorder %s32, %s35
      %p41 = scmp.eq.s32.totalorder %s22, 0
      %p42 = por %p40, %p41
      %p43 = scmp.ne.s32.totalorder %s32, %s35
      %p44 = scmp.eq.s32.totalorder %s27, 1
      %p45 = por %p43, %p44
      %p46 = scmp.ne.s32.totalorder %s35, %s36
      %p47 = scmp.eq.s32.totalorder %s27, 0
      %p48 = por %p46, %p47
      %p49 = scmp.ne.s32.totalorder %s35, %s36
      %p50 = scmp.eq.s32.totalorder %s28, 1
      %p51 = por %p49, %p50
      %p53 = scmp.ne.s32.totalorder %s36, %s52
      %p54 = scmp.eq.s32.totalorder %s28, 0
      %p55 = por %p53, %p54
      %s57 = sadd.s32 %s56, 1
      %p60 = scmp.eq.s32.totalorder %s22, 1
      %p61 = scmp.ne.s32.totalorder %s56, %s58
      %p62 = scmp.eq.s32.totalorder %s22, 0
      %p63 = por %p61, %p62
      %p64 = scmp.ne.s32.totalorder %s56, %s58
      %p65 = scmp.eq.s32.totalorder %s27, 1
      %p66 = por %p64, %p65
      %p67 = scmp.ne.s32.totalorder %s58, %s59
      %p68 = scmp.eq.s32.totalorder %s27, 0
      %p69 = por %p67, %p68
      %p70 = scmp.ne.s32.totalorder %s58, %s59
      %p71 = scmp.eq.s32.totalorder %s28, 1
      %p72 = por %p70, %p71
      %p74 = scmp.ne.s32.totalorder %s59, %s73
      %p75 = scmp.eq.s32.totalorder %s28, 0
      %p76 = por %p74, %p75
      %s78 = sadd.s32 %s77, 1
      %p81 = scmp.eq.s32.totalorder %s22, 1
      %p82 = scmp.ne.s32.totalorder %s77, %s79
      %p83 = scmp.eq.s32.totalorder %s22, 0
      %p84 = por %p82, %p83
      %p85 = scmp.ne.s32.totalorder %s77, %s79
      %p86 = scmp.eq.s32.totalorder %s27, 1
      %p87 = por %p85, %p86
      %p88 = scmp.ne.s32.totalorder %s79, %s80
      %p89 = scmp.eq.s32.totalorder %s27, 0
      %p90 = por %p88, %p89
      %p91 = scmp.ne.s32.totalorder %s79, %s80
      %p92 = scmp.eq.s32.totalorder %s28, 1
      %p93 = por %p91, %p92
      %p95 = scmp.ne.s32.totalorder %s80, %s94
      %p96 = scmp.eq.s32.totalorder %s28, 0
      %p97 = por %p95, %p96
      %s99 = sadd.s32 %s98, 1
      %p102 = scmp.eq.s32.totalorder %s22, 1
      %p103 = scmp.ne.s32.totalorder %s98, %s100
      %p104 = scmp.eq.s32.totalorder %s22, 0
      %p105 = por %p103, %p104
      %p106 = scmp.ne.s32.totalorder %s98, %s100
      %p107 = scmp.eq.s32.totalorder %s27, 1
      %p108 = por %p106, %p107
      %p109 = scmp.ne.s32.totalorder %s100, %s101
      %p110 = scmp.eq.s32.totalorder %s27, 0
      %p111 = por %p109, %p110
      %p112 = scmp.ne.s32.totalorder %s100, %s101
      %p113 = scmp.eq.s32.totalorder %s28, 1
      %p114 = por %p112, %p113
      %p116 = scmp.ne.s32.totalorder %s101, %s115
      %p117 = scmp.eq.s32.totalorder %s28, 0
      %p118 = por %p116, %p117
      %s120 = sadd.s32 %s119, 1
      %p123 = scmp.eq.s32.totalorder %s22, 1
      %p124 = scmp.ne.s32.totalorder %s119, %s121
      %p125 = scmp.eq.s32.totalorder %s22, 0
      %p126 = por %p124, %p125
      %p127 = scmp.ne.s32.totalorder %s119, %s121
      %p128 = scmp.eq.s32.totalorder %s27, 1
      %p129 = por %p127, %p128
      %p130 = scmp.ne.s32.totalorder %s121, %s122
      %p131 = scmp.eq.s32.totalorder %s27, 0
      %p132 = por %p130, %p131
      %p133 = scmp.ne.s32.totalorder %s121, %s122
      %p134 = scmp.eq.s32.totalorder %s28, 1
      %p135 = por %p133, %p134
      %p137 = scmp.ne.s32.totalorder %s122, %s136
      %p138 = scmp.eq.s32.totalorder %s28, 0
      %p139 = por %p137, %p138
      %s141 = sadd.s32 %s140, 1
      %p144 = scmp.eq.s32.totalorder %s22, 1
      %p145 = scmp.ne.s32.totalorder %s140, %s142
      %p146 = scmp.eq.s32.totalorder %s22, 0
      %p147 = por %p145, %p146
      %p148 = scmp.ne.s32.totalorder %s140, %s142
      %p149 = scmp.eq.s32.totalorder %s27, 1
      %p150 = por %p148, %p149
      %p151 = scmp.ne.s32.totalorder %s142, %s143
      %p152 = scmp.eq.s32.totalorder %s27, 0
      %p153 = por %p151, %p152
      %p154 = scmp.ne.s32.totalorder %s142, %s143
      %p155 = scmp.eq.s32.totalorder %s28, 1
      %p156 = por %p154, %p155
      %p158 = scmp.ne.s32.totalorder %s143, %s157
      %p159 = scmp.eq.s32.totalorder %s28, 0
      %p160 = por %p158, %p159
      %s162 = sadd.s32 %s161, 1
      %p165 = scmp.eq.s32.totalorder %s22, 1
      %p166 = scmp.ne.s32.totalorder %s161, %s163
      %p167 = scmp.eq.s32.totalorder %s22, 0
      %p168 = por %p166, %p167
      %p169 = scmp.ne.s32.totalorder %s161, %s163
      %p170 = scmp.eq.s32.totalorder %s27, 1
      %p171 = por %p169, %p170
      %p172 = scmp.ne.s32.totalorder %s163, %s164
      %p173 = scmp.eq.s32.totalorder %s27, 0
      %p174 = por %p172, %p173
      %p175 = scmp.ne.s32.totalorder %s163, %s164
      %p176 = scmp.eq.s32.totalorder %s28, 1
      %p177 = por %p175, %p176
      %p179 = scmp.ne.s32.totalorder %s164, %s178
      %p180 = scmp.eq.s32.totalorder %s28, 0
      %p181 = por %p179, %p180
      %s183 = sadd.s32 %s182, 1
      %p186 = scmp.eq.s32.totalorder %s22, 1
      %p187 = scmp.ne.s32.totalorder %s182, %s184
      %p188 = scmp.eq.s32.totalorder %s22, 0
      %p189 = por %p187, %p188
      %p190 = scmp.ne.s32.totalorder %s182, %s184
      %p191 = scmp.eq.s32.totalorder %s27, 1
      %p192 = por %p190, %p191
      %p193 = scmp.ne.s32.totalorder %s184, %s185
      %p194 = scmp.eq.s32.totalorder %s27, 0
      %p195 = por %p193, %p194
      %p196 = scmp.ne.s32.totalorder %s184, %s185
      %p197 = scmp.eq.s32.totalorder %s28, 1
      %p198 = por %p196, %p197
      %p200 = scmp.ne.s32.totalorder %s185, %s199
      %p201 = scmp.eq.s32.totalorder %s28, 0
      %p202 = por %p200, %p201
      %s204 = sadd.s32 %s203, 1
      %p207 = scmp.eq.s32.totalorder %s22, 1
      %p208 = scmp.ne.s32.totalorder %s203, %s205
      %p209 = scmp.eq.s32.totalorder %s22, 0
      %p210 = por %p208, %p209
      %p211 = scmp.ne.s32.totalorder %s203, %s205
      %p212 = scmp.eq.s32.totalorder %s27, 1
      %p213 = por %p211, %p212
      %p214 = scmp.ne.s32.totalorder %s205, %s206
      %p215 = scmp.eq.s32.totalorder %s27, 0
      %p216 = por %p214, %p215
      %p217 = scmp.ne.s32.totalorder %s205, %s206
      %p218 = scmp.eq.s32.totalorder %s28, 1
      %p219 = por %p217, %p218
      %p221 = scmp.ne.s32.totalorder %s206, %s220
      %p222 = scmp.eq.s32.totalorder %s28, 0
      %p223 = por %p221, %p222
      %s224 = ssub.s32 %s22, %s29
      %p225 = scmp.eq.s32.totalorder %s224, 0
      %s227 = sadd.s32 %s226, 1
      %s228 = scalar_select %p225, %s226, %s227
      %p231 = pneg %p225
      %p232 = scmp.eq.s32.totalorder %s22, 1
      %p233 = por %p231, %p232
      %p234 = scmp.ne.s32.totalorder %s226, %s229
      %p235 = scmp.eq.s32.totalorder %s22, 0
      %p236 = por %p234, %p235
      %p237 = scmp.ne.s32.totalorder %s226, %s229
      %p238 = scmp.eq.s32.totalorder %s27, 1
      %p239 = por %p237, %p238
      %p240 = scmp.ne.s32.totalorder %s229, %s230
      %p241 = scmp.eq.s32.totalorder %s27, 0
      %p242 = por %p240, %p241
      %p243 = scmp.ne.s32.totalorder %s229, %s230
      %p244 = scmp.eq.s32.totalorder %s28, 1
      %p245 = por %p243, %p244
      %p247 = scmp.ne.s32.totalorder %s230, %s246
      %p248 = scmp.eq.s32.totalorder %s28, 0
      %p249 = por %p247, %p248
      %p250 = scmp.le.s32.totalorder 1, %s22
      %p251 = scmp.lt.s32.totalorder %s22, 3
      %p252 = pnand %p250, %p251
      %p253 = pneg %p252
      // Predicated region
      $region9: #{tpu_custom_call.1} parent=5 // pred_check
        _
      $region10: #{tpu_custom_call.1} parent=5 // pred_check_branch
        %255 = sbr.rel (%p252) target = $region12
      $region11: #{tpu_custom_call.1} parent=5 // pred_region
        %s256 = ssub.s32 %s22, 1
        // Predicated region
        $region13: #{tpu_custom_call.1} parent=11 // pred_check
          %p257 = pneg %p69
        $region14: #{tpu_custom_call.1} parent=11 // pred_check_branch
          %259 = sbr.rel (%p257) target = $region16
        $region15: #{tpu_custom_call.1} parent=11 // pred_region
          _
        $region16: #{tpu_custom_call.1} parent=11 // pred_fallthru
          _
        // Predicated region
        $region17: #{tpu_custom_call.1} parent=11 // pred_check
          %p260 = pneg %p90
        $region18: #{tpu_custom_call.1} parent=11 // pred_check_branch
          %262 = sbr.rel (%p260) target = $region20
        $region19: #{tpu_custom_call.1} parent=11 // pred_region
          _
        $region20: #{tpu_custom_call.1} parent=11 // pred_fallthru
          _
        // Predicated region
        $region21: #{tpu_custom_call.1} parent=11 // pred_check
          %p263 = pneg %p111
        $region22: #{tpu_custom_call.1} parent=11 // pred_check_branch
          %265 = sbr.rel (%p263) target = $region24
        $region23: #{tpu_custom_call.1} parent=11 // pred_region
          _
        $region24: #{tpu_custom_call.1} parent=11 // pred_fallthru
          _
        // Predicated region
        $region25: #{tpu_custom_call.1} parent=11 // pred_check
          %p266 = pneg %p132
        $region26: #{tpu_custom_call.1} parent=11 // pred_check_branch
          %268 = sbr.rel (%p266) target = $region28
        $region27: #{tpu_custom_call.1} parent=11 // pred_region
          _
        $region28: #{tpu_custom_call.1} parent=11 // pred_fallthru
          _
        // Predicated region
        $region29: #{tpu_custom_call.1} parent=11 // pred_check
          %p269 = pneg %p153
        $region30: #{tpu_custom_call.1} parent=11 // pred_check_branch
          %271 = sbr.rel (%p269) target = $region32
        $region31: #{tpu_custom_call.1} parent=11 // pred_region
          _
        $region32: #{tpu_custom_call.1} parent=11 // pred_fallthru
          _
        // Predicated region
        $region33: #{tpu_custom_call.1} parent=11 // pred_check
          %p272 = pneg %p174
        $region34: #{tpu_custom_call.1} parent=11 // pred_check_branch
          %274 = sbr.rel (%p272) target = $region36
        $region35: #{tpu_custom_call.1} parent=11 // pred_region
          _
        $region36: #{tpu_custom_call.1} parent=11 // pred_fallthru
          _
        // Predicated region
        $region37: #{tpu_custom_call.1} parent=11 // pred_check
          %p275 = pneg %p195
        $region38: #{tpu_custom_call.1} parent=11 // pred_check_branch
          %277 = sbr.rel (%p275) target = $region40
        $region39: #{tpu_custom_call.1} parent=11 // pred_region
          %s279 = ssub.s32 2048, 2048
          %280 = vsyncadd [#allocation6], %s279
          %s281 = sshll.u32 [#allocation5], 4
          %s282 = int_to_ptr.vmem [resolvable:$true] %s281
          %287 = dma.hbm_to_vmem [thread:$0]  %s7, 2048, %s282, [#allocation6], 128, 128, 8
        $region40: #{tpu_custom_call.1} parent=11 // pred_fallthru
          _
        // Predicated region
        $region41: #{tpu_custom_call.1} parent=11 // pred_check
          %p288 = pneg %p216
        $region42: #{tpu_custom_call.1} parent=11 // pred_check_branch
          %290 = sbr.rel (%p288) target = $region44
        $region43: #{tpu_custom_call.1} parent=11 // pred_region
          _
        $region44: #{tpu_custom_call.1} parent=11 // pred_fallthru
          _
      $region12: #{tpu_custom_call.1} parent=5 // pred_fallthru
        _
      %p291 = scmp.lt.s32.totalorder %s22, 2
      // Predicated region
      $region45: #{tpu_custom_call.1} parent=5 // pred_check
        %p292 = pneg %p291
      $region46: #{tpu_custom_call.1} parent=5 // pred_check_branch
        %294 = sbr.rel (%p292) target = $region48
      $region47: #{tpu_custom_call.1} parent=5 // pred_region
        // Predicated region
        $region49: #{tpu_custom_call.1} parent=47 // pred_check
          %p295 = pneg %p42
        $region50: #{tpu_custom_call.1} parent=47 // pred_check_branch
          %297 = sbr.rel (%p295) target = $region52
        $region51: #{tpu_custom_call.1} parent=47 // pred_region
          %s298 = sand.u32 %s32, 1
          %s299 = scalar_lea.sflag [#allocation3], %s298
          %s300 = sand.u32 %s32, 1
          %s301 = smul.addr %s300, 64
          %s302 = scalar_lea.vmem [#allocation2], %s301
          %s303 = smul.u32 4, %s22
          %s305 = ssub.s32 1024, 1024
          %306 = vsyncadd %s299, %s305
          %s307 = smul.addr %s303, 64
          %s308 = scalar_lea.hbm %s0, %s307
          %s309 = sshll.u32 %s302, 4
          %s310 = int_to_ptr.vmem [resolvable:$true] %s309
          %315 = dma.hbm_to_vmem [thread:$0]  %s308, 1024, %s310, %s299, 512, 256, 16
        $region52: #{tpu_custom_call.1} parent=47 // pred_fallthru
          _
      $region48: #{tpu_custom_call.1} parent=5 // pred_fallthru
        _
      %p316 = scmp.le.s32.totalorder 1, %s22
      %p317 = scmp.lt.s32.totalorder %s22, 3
      %p318 = pnand %p316, %p317
      %p319 = pneg %p318
      // Predicated region
      $region53: #{tpu_custom_call.1} parent=5 // pred_check
        _
      $region54: #{tpu_custom_call.1} parent=5 // pred_check_branch
        %321 = sbr.rel (%p318) target = $region56
      $region55: #{tpu_custom_call.1} parent=5 // pred_region
        %s322 = ssub.s32 %s22, 1
        %s323 = sand.u32 %s35, 1
        %s324 = scalar_lea.sflag [#allocation3], %s323
        %s325 = sand.u32 %s35, 1
        %s326 = smul.addr %s325, 64
        %s327 = scalar_lea.vmem [#allocation2], %s326
        // Predicated region
        $region57: #{tpu_custom_call.1} parent=55 // pred_check
          %p328 = pneg %p48
        $region58: #{tpu_custom_call.1} parent=55 // pred_check_branch
          %330 = sbr.rel (%p328) target = $region60
        $region59: #{tpu_custom_call.1} parent=55 // pred_region
          %331 = dma.done %s324, 1024
        $region60: #{tpu_custom_call.1} parent=55 // pred_fallthru
          _
        // Predicated region
        $region61: #{tpu_custom_call.1} parent=55 // pred_check
          %p332 = pneg %p195
        $region62: #{tpu_custom_call.1} parent=55 // pred_check_branch
          %334 = sbr.rel (%p332) target = $region64
        $region63: #{tpu_custom_call.1} parent=55 // pred_region
          %335 = dma.done [#allocation6], 2048
        $region64: #{tpu_custom_call.1} parent=55 // pred_fallthru
          _
        %s336 = sand.u32 %s35, 1
        %s337 = scalar_lea.sflag [#allocation3], %s336
        %s338 = sand.u32 %s35, 1
        %s339 = smul.addr %s338, 64
        %s340 = scalar_lea.vmem [#allocation2], %s339
        %p341 = pneg %p48
        %p342 = pneg %p45
        %p343 = pneg %p69
        %p344 = pneg %p66
        %p345 = pneg %p90
        %p346 = pneg %p87
        %p347 = pneg %p111
        %p348 = pneg %p108
        %p349 = pneg %p132
        %p350 = pneg %p129
        %p351 = pneg %p153
        %p352 = pneg %p150
        %p353 = pneg %p174
        %p354 = pneg %p171
        %p355 = pneg %p195
        %p356 = pneg %p192
        %p357 = pneg %p216
        %p358 = pneg %p213
        %p359 = pneg %p242
        %p360 = pneg %p239
        %s361 = sand.u32 %s229, 1
        %s362 = scalar_lea.sflag [#allocation4], %s361
        %s363 = sand.u32 %s229, 1
        %s364 = smul.addr %s363, 4
        %s365 = scalar_lea.vmem [#allocation7], %s364
        %s366 = smul.u32 4, %s27
        %v368 = vld [vmem:[%s1] sm:$0xf]
        %v369 = vld [vmem:[%s1 + $0x4] sm:$0xf]
        %v370 = vld [vmem:[%s1 + $0x8] sm:$0x3]
        %v371 = vld [vmem:[%s327] sm:$0xff]
        %v372 = vld [vmem:[%s327 + $0x8] sm:$0xff]
        %v373 = vld [vmem:[%s327 + $0x10] sm:$0xff]
        %v374 = vld [vmem:[%s327 + $0x18] sm:$0xff]
        %v375 = vld [vmem:[%s327 + $0x20] sm:$0xff]
        %v376 = vld [vmem:[%s327 + $0x28] sm:$0xff]
        %v377 = vld [vmem:[%s327 + $0x30] sm:$0xff]
        %v378 = vld [vmem:[%s327 + $0x38] sm:$0xff]
        %v379 = vld [vmem:[%s2] sm:$0xff]
        %v380 = vld [vmem:[%s2 + $0x8] sm:$0xff]
        %v381 = vld [vmem:[%s2 + $0x10] sm:$0xf]
        %383 = vset.pattern.permute.xlu0 0
        %384 = vperm.xlu0 %383, %v379
        %v385 = vpop.permute.xlu0 %384
        %388 = vset.pattern.permute.xlu0 0
        %389 = vperm.xlu0 %388, %v380
        %v390 = vpop.permute.xlu0 %389
        %393 = vset.pattern.permute.xlu0 0
        %394 = vperm.xlu0 %393, %v381
        %v395 = vpop.permute.xlu0 %394
        %v400 = vunpack.c.l.b16 %v368
        %v401 = vunpack.c.l.b16 %v369
        %v402 = vunpack.c.l.b16 %v370
        %v403 = vpack.c.b16 %v401, %v400
        %v404 = vpack.c.b16 %v402, %v402
        %v413 = vunpack.c.l.b16 %v371
        %v414 = vunpack.c.h.b16 %v371
        %v415 = vunpack.c.l.b16 %v372
        %v416 = vunpack.c.h.b16 %v372
        %v417 = vunpack.c.l.b16 %v373
        %v418 = vunpack.c.h.b16 %v373
        %v419 = vunpack.c.l.b16 %v374
        %v420 = vunpack.c.h.b16 %v374
        %v421 = vunpack.c.l.b16 %v375
        %v422 = vunpack.c.h.b16 %v375
        %v423 = vunpack.c.l.b16 %v376
        %v424 = vunpack.c.h.b16 %v376
        %v425 = vunpack.c.l.b16 %v377
        %v426 = vunpack.c.h.b16 %v377
        %v427 = vunpack.c.l.b16 %v378
        %v428 = vunpack.c.h.b16 %v378
        %v429 = vpack.c.b16 %v417, %v413
        %v430 = vpack.c.b16 %v418, %v414
        %v431 = vpack.c.b16 %v419, %v415
        %v432 = vpack.c.b16 %v420, %v416
        %v433 = vpack.c.b16 %v425, %v421
        %v434 = vpack.c.b16 %v426, %v422
        %v435 = vpack.c.b16 %v427, %v423
        %v436 = vpack.c.b16 %v428, %v424
        %vm445 = vcmask 261120
        %v447 = vsel %vm445, %v403, 0
        %v450 = vsel %vm445, %v404, 0
        %452 = vmatprep.subr.bf16.mxu0 %v430
        %453 = vmatpush1.bf16.msra.mxu0 %v429
        %454 = vmatprep.subr.bf16.mxu0 %v434
        %455 = vmatpush1.bf16.msra.mxu0 %v433
        %456 = vmatprep.subr.bf16.mxu0 0
        %457 = vmatpush1.bf16.msra.mxu0 0
        %458 = vmatprep.subr.bf16.mxu0 0
        %459 = vmatpush1.bf16.msra.mxu0 0
        %460 = vmatprep.subr.bf16.mxu0 0
        %461 = vmatpush1.bf16.msra.mxu0 0
        %462 = vmatprep.subr.bf16.mxu0 0
        %463 = vmatpush1.bf16.msra.mxu0 0
        %464 = vmatprep.subr.bf16.mxu0 0
        %465 = vmatpush1.bf16.msra.mxu0 0
        %466 = vmatprep.subr.bf16.mxu0 0
        %467 = vmatpush1.bf16.msra.mxu0 0
        %468 = vmatprep.subr.bf16.mxu0 0
        %469 = vmatpush1.bf16.msra.mxu0 0
        %470 = vmatprep.subr.bf16.mxu0 0
        %471 = vmatpush1.bf16.msra.mxu0 0
        %472 = vmatprep.subr.bf16.mxu0 0
        %473 = vmatpush1.bf16.msra.mxu0 0
        %474 = vmatprep.subr.bf16.mxu0 0
        %475 = vmatpush1.bf16.msra.mxu0 0
        %476 = vmatprep.subr.bf16.mxu0 0
        %477 = vmatpush1.bf16.msra.mxu0 0
        %478 = vmatprep.subr.bf16.mxu0 0
        %479 = vmatpush1.bf16.msra.mxu0 0
        %480 = vmatprep.subr.bf16.mxu0 0
        %481 = vmatpush1.bf16.msra.mxu0 0
        %482 = vmatprep.subr.bf16.mxu0 0
        %483 = vmatpush1.bf16.msra.mxu0 0
        %484 = vmatprep.mubr.bf16.mxu0 0
        %485 = vmatmul.mubr.bf16.gmra.mrb[0].mxu0 %v447
        %v486 = vpop.f32.mrb[0].mxu0
        %v487 = vadd.f32 %v385, %v486
        %v488 = vpop.f32.mrb[0].mxu0
        %v489 = vadd.f32 %v385, %v488
        %v490 = vpop.f32.mrb[0].mxu0
        %v491 = vadd.f32 %v390, %v490
        %v492 = vpop.f32.mrb[0].mxu0
        %v493 = vadd.f32 %v390, %v492
        %494 = vmatprep.mubr.bf16.mxu0 0
        %495 = vmatmul.mubr.bf16.gmra.mrb[0].mxu0 %v450
        %v496 = vpop.f32.mrb[0].mxu0
        %v497 = vadd.f32 %v395, %v496
        %v498 = vpop.f32.mrb[0].mxu0
        %v499 = vadd.f32 %v395, %v498
        %v500 = vpop.f32.mrb[0].mxu0
        %v501 = vpop.f32.mrb[0].mxu0
        %502 = vdwg.mxu0
        %503 = vmatprep.subr.bf16.mxu0 %v432
        %504 = vmatpush1.bf16.msra.mxu0 %v431
        %505 = vmatprep.subr.bf16.mxu0 %v436
        %506 = vmatpush1.bf16.msra.mxu0 %v435
        %507 = vmatprep.subr.bf16.mxu0 0
        %508 = vmatpush1.bf16.msra.mxu0 0
        %509 = vmatprep.subr.bf16.mxu0 0
        %510 = vmatpush1.bf16.msra.mxu0 0
        %511 = vmatprep.subr.bf16.mxu0 0
        %512 = vmatpush1.bf16.msra.mxu0 0
        %513 = vmatprep.subr.bf16.mxu0 0
        %514 = vmatpush1.bf16.msra.mxu0 0
        %515 = vmatprep.subr.bf16.mxu0 0
        %516 = vmatpush1.bf16.msra.mxu0 0
        %517 = vmatprep.subr.bf16.mxu0 0
        %518 = vmatpush1.bf16.msra.mxu0 0
        %519 = vmatprep.subr.bf16.mxu0 0
        %520 = vmatpush1.bf16.msra.mxu0 0
        %521 = vmatprep.subr.bf16.mxu0 0
        %522 = vmatpush1.bf16.msra.mxu0 0
        %523 = vmatprep.subr.bf16.mxu0 0
        %524 = vmatpush1.bf16.msra.mxu0 0
        %525 = vmatprep.subr.bf16.mxu0 0
        %526 = vmatpush1.bf16.msra.mxu0 0
        %527 = vmatprep.subr.bf16.mxu0 0
        %528 = vmatpush1.bf16.msra.mxu0 0
        %529 = vmatprep.subr.bf16.mxu0 0
        %530 = vmatpush1.bf16.msra.mxu0 0
        %531 = vmatprep.subr.bf16.mxu0 0
        %532 = vmatpush1.bf16.msra.mxu0 0
        %533 = vmatprep.subr.bf16.mxu0 0
        %534 = vmatpush1.bf16.msra.mxu0 0
        %535 = vmatprep.mubr.bf16.mxu0 0
        %536 = vmatmul.mubr.bf16.gmra.mrb[0].mxu0 %v447
        %v537 = vpop.f32.mrb[0].mxu0
        %v538 = vadd.f32 %v385, %v537
        %v539 = vpop.f32.mrb[0].mxu0
        %v540 = vadd.f32 %v385, %v539
        %v541 = vpop.f32.mrb[0].mxu0
        %v542 = vadd.f32 %v390, %v541
        %v543 = vpop.f32.mrb[0].mxu0
        %v544 = vadd.f32 %v390, %v543
        %545 = vmatprep.mubr.bf16.mxu0 0
        %546 = vmatmul.mubr.bf16.gmra.mrb[0].mxu0 %v450
        %v547 = vpop.f32.mrb[0].mxu0
        %v548 = vadd.f32 %v395, %v547
        %v549 = vpop.f32.mrb[0].mxu0
        %v550 = vadd.f32 %v395, %v549
        %v551 = vpop.f32.mrb[0].mxu0
        %v552 = vpop.f32.mrb[0].mxu0
        %553 = vdwg.mxu0
        %v554 = vld [vmem:[%s3] sm:$0xff]
        %v555 = vld [vmem:[%s3 + $0x8] sm:$0xff]
        %v556 = vld [vmem:[%s3 + $0x10] sm:$0xf]
        %558 = vset.pattern.permute.xlu0 0
        %559 = vperm.xlu0 %558, %v554
        %v560 = vpop.permute.xlu0 %559
        %563 = vset.pattern.permute.xlu0 0
        %564 = vperm.xlu0 %563, %v555
        %v565 = vpop.permute.xlu0 %564
        %568 = vset.pattern.permute.xlu0 0
        %569 = vperm.xlu0 %568, %v556
        %v570 = vpop.permute.xlu0 %569
        %v572 = vmul.f32 %v487, %v560
        %v573 = vmul.f32 %v489, %v560
        %v574 = vmul.f32 %v538, %v560
        %v575 = vmul.f32 %v540, %v560
        %v576 = vmul.f32 %v491, %v565
        %v577 = vmul.f32 %v493, %v565
        %v578 = vmul.f32 %v542, %v565
        %v579 = vmul.f32 %v544, %v565
        %v580 = vmul.f32 %v497, %v570
        %v581 = vmul.f32 %v499, %v570
        %v582 = vmul.f32 %v548, %v570
        %v583 = vmul.f32 %v550, %v570
        %v584 = vld [vmem:[%s4] sm:$0xff]
        %v585 = vld [vmem:[%s4 + $0x8] sm:$0xff]
        %v586 = vld [vmem:[%s4 + $0x10] sm:$0xf]
        %588 = vset.pattern.permute.xlu0 0
        %589 = vperm.xlu0 %588, %v584
        %v590 = vpop.permute.xlu0 %589
        %593 = vset.pattern.permute.xlu0 0
        %594 = vperm.xlu0 %593, %v585
        %v595 = vpop.permute.xlu0 %594
        %598 = vset.pattern.permute.xlu0 0
        %599 = vperm.xlu0 %598, %v586
        %v600 = vpop.permute.xlu0 %599
        %v602 = vadd.f32 %v572, %v590
        %v603 = vadd.f32 %v573, %v590
        %v604 = vadd.f32 %v574, %v590
        %v605 = vadd.f32 %v575, %v590
        %v606 = vadd.f32 %v576, %v595
        %v607 = vadd.f32 %v577, %v595
        %v608 = vadd.f32 %v578, %v595
        %v609 = vadd.f32 %v579, %v595
        %v610 = vadd.f32 %v580, %v600
        %v611 = vadd.f32 %v581, %v600
        %v612 = vadd.f32 %v582, %v600
        %v613 = vadd.f32 %v583, %v600
        %v614 = vmul.f32 %v602, %v602
        %v615 = vmul.f32 %v603, %v603
        %v616 = vmul.f32 %v604, %v604
        %v617 = vmul.f32 %v605, %v605
        %v618 = vmul.f32 %v606, %v606
        %v619 = vmul.f32 %v607, %v607
        %v620 = vmul.f32 %v608, %v608
        %v621 = vmul.f32 %v609, %v609
        %v622 = vmul.f32 %v610, %v610
        %v623 = vmul.f32 %v611, %v611
        %v624 = vmul.f32 %v612, %v612
        %v625 = vmul.f32 %v613, %v613
        %v626 = vpack.c.bf16 %v618, %v614
        %v627 = vpack.c.bf16 %v619, %v615
        %v628 = vpack.c.bf16 %v620, %v616
        %v629 = vpack.c.bf16 %v621, %v617
        %v630 = vpack.c.bf16 %v622, %v622
        %v631 = vpack.c.bf16 %v623, %v623
        %v632 = vpack.c.bf16 %v624, %v624
        %v633 = vpack.c.bf16 %v625, %v625
        %v634 = vld [vmem:[%s5] sm:$0xf]
        %v635 = vld [vmem:[%s5 + $0x4] sm:$0xf]
        %v636 = vld [vmem:[%s5 + $0x8] sm:$0xf]
        %v637 = vld [vmem:[%s5 + $0xc] sm:$0xf]
        %v638 = vld [vmem:[%s5 + $0x10] sm:$0xf]
        %v639 = vld [vmem:[%s5 + $0x14] sm:$0xf]
        %v640 = vld [vmem:[%s5 + $0x18] sm:$0xf]
        %v641 = vld [vmem:[%s5 + $0x1c] sm:$0xf]
        %v642 = vld [vmem:[%s5 + $0x20] sm:$0xf]
        %v643 = vld [vmem:[%s5 + $0x24] sm:$0xf]
        %v644 = vld [vmem:[%s5 + $0x28] sm:$0xf]
        %v645 = vld [vmem:[%s5 + $0x2c] sm:$0xf]
        %v646 = vld [vmem:[%s5 + $0x30] sm:$0xf]
        %v647 = vld [vmem:[%s5 + $0x34] sm:$0xf]
        %v648 = vld [vmem:[%s5 + $0x38] sm:$0xf]
        %v649 = vld [vmem:[%s5 + $0x3c] sm:$0xf]
        %v650 = vld [vmem:[%s5 + $0x40] sm:$0xf]
        %v651 = vld [vmem:[%s5 + $0x44] sm:$0xf]
        %v652 = vld [vmem:[%s5 + $0x48] sm:$0xf]
        %v653 = vld [vmem:[%s5 + $0x4c] sm:$0xf]
        %v654 = vld [vmem:[%s5 + $0x50] sm:$0xf]
        %v655 = vld [vmem:[%s5 + $0x54] sm:$0xf]
        %v656 = vld [vmem:[%s5 + $0x58] sm:$0xf]
        %v657 = vld [vmem:[%s5 + $0x5c] sm:$0xf]
        %v658 = vld [vmem:[%s5 + $0x60] sm:$0xf]
        %v659 = vld [vmem:[%s5 + $0x64] sm:$0xf]
        %v660 = vld [vmem:[%s5 + $0x68] sm:$0xf]
        %v661 = vld [vmem:[%s5 + $0x6c] sm:$0xf]
        %v662 = vld [vmem:[%s5 + $0x70] sm:$0xf]
        %v663 = vld [vmem:[%s5 + $0x74] sm:$0xf]
        %v664 = vld [vmem:[%s5 + $0x78] sm:$0xf]
        %v665 = vld [vmem:[%s5 + $0x7c] sm:$0xf]
        %v666 = vld [vmem:[%s5 + $0x80] sm:$0xf]
        %v667 = vld [vmem:[%s5 + $0x84] sm:$0xf]
        %v668 = vld [vmem:[%s5 + $0x88] sm:$0xf]
        %v669 = vld [vmem:[%s5 + $0x8c] sm:$0xf]
        %v670 = vld [vmem:[%s5 + $0x90] sm:$0xf]
        %v671 = vld [vmem:[%s5 + $0x94] sm:$0xf]
        %v672 = vld [vmem:[%s5 + $0x98] sm:$0xf]
        %v673 = vld [vmem:[%s5 + $0x9c] sm:$0xf]
        %v674 = vld [vmem:[%s5 + $0xa0] sm:$0xf]
        %v675 = vld [vmem:[%s5 + $0xa4] sm:$0xf]
        %v676 = vld [vmem:[%s5 + $0xa8] sm:$0xf]
        %v677 = vld [vmem:[%s5 + $0xac] sm:$0xf]
        %v678 = vld [vmem:[%s5 + $0xb0] sm:$0xf]
        %v679 = vld [vmem:[%s5 + $0xb4] sm:$0xf]
        %v680 = vld [vmem:[%s5 + $0xb8] sm:$0xf]
        %v681 = vld [vmem:[%s5 + $0xbc] sm:$0xf]
        %v682 = vld [vmem:[%s5 + $0xc0] sm:$0xf]
        %v683 = vld [vmem:[%s5 + $0xc4] sm:$0xf]
        %v684 = vld [vmem:[%s5 + $0xc8] sm:$0xf]
        %v685 = vld [vmem:[%s5 + $0xcc] sm:$0xf]
        %v686 = vld [vmem:[%s5 + $0xd0] sm:$0xf]
        %v687 = vld [vmem:[%s5 + $0xd4] sm:$0xf]
        %v688 = vld [vmem:[%s5 + $0xd8] sm:$0xf]
        %v689 = vld [vmem:[%s5 + $0xdc] sm:$0xf]
        %v690 = vld [vmem:[%s5 + $0xe0] sm:$0xf]
        %v691 = vld [vmem:[%s5 + $0xe4] sm:$0xf]
        %v692 = vld [vmem:[%s5 + $0xe8] sm:$0xf]
        %v693 = vld [vmem:[%s5 + $0xec] sm:$0xf]
        %v694 = vld [vmem:[%s5 + $0xf0] sm:$0xf]
        %v695 = vld [vmem:[%s5 + $0xf4] sm:$0xf]
        %v696 = vld [vmem:[%s5 + $0xf8] sm:$0xf]
        %v697 = vld [vmem:[%s5 + $0xfc] sm:$0xf]
        %v762 = vunpack.c.l.b16 %v634
        %v763 = vunpack.c.l.b16 %v635
        %v764 = vunpack.c.l.b16 %v636
        %v765 = vunpack.c.l.b16 %v637
        %v766 = vunpack.c.l.b16 %v638
        %v767 = vunpack.c.l.b16 %v639
        %v768 = vunpack.c.l.b16 %v640
        %v769 = vunpack.c.l.b16 %v641
        %v770 = vunpack.c.l.b16 %v642
        %v771 = vunpack.c.l.b16 %v643
        %v772 = vunpack.c.l.b16 %v644
        %v773 = vunpack.c.l.b16 %v645
        %v774 = vunpack.c.l.b16 %v646
        %v775 = vunpack.c.l.b16 %v647
        %v776 = vunpack.c.l.b16 %v648
        %v777 = vunpack.c.l.b16 %v649
        %v778 = vunpack.c.l.b16 %v650
        %v779 = vunpack.c.l.b16 %v651
        %v780 = vunpack.c.l.b16 %v652
        %v781 = vunpack.c.l.b16 %v653
        %v782 = vunpack.c.l.b16 %v654
        %v783 = vunpack.c.l.b16 %v655
        %v784 = vunpack.c.l.b16 %v656
        %v785 = vunpack.c.l.b16 %v657
        %v786 = vunpack.c.l.b16 %v658
        %v787 = vunpack.c.l.b16 %v659
        %v788 = vunpack.c.l.b16 %v660
        %v789 = vunpack.c.l.b16 %v661
        %v790 = vunpack.c.l.b16 %v662
        %v791 = vunpack.c.l.b16 %v663
        %v792 = vunpack.c.l.b16 %v664
        %v793 = vunpack.c.l.b16 %v665
        %v794 = vunpack.c.l.b16 %v666
        %v795 = vunpack.c.l.b16 %v667
        %v796 = vunpack.c.l.b16 %v668
        %v797 = vunpack.c.l.b16 %v669
        %v798 = vunpack.c.l.b16 %v670
        %v799 = vunpack.c.l.b16 %v671
        %v800 = vunpack.c.l.b16 %v672
        %v801 = vunpack.c.l.b16 %v673
        %v802 = vunpack.c.l.b16 %v674
        %v803 = vunpack.c.l.b16 %v675
        %v804 = vunpack.c.l.b16 %v676
        %v805 = vunpack.c.l.b16 %v677
        %v806 = vunpack.c.l.b16 %v678
        %v807 = vunpack.c.l.b16 %v679
        %v808 = vunpack.c.l.b16 %v680
        %v809 = vunpack.c.l.b16 %v681
        %v810 = vunpack.c.l.b16 %v682
        %v811 = vunpack.c.l.b16 %v683
        %v812 = vunpack.c.l.b16 %v684
        %v813 = vunpack.c.l.b16 %v685
        %v814 = vunpack.c.l.b16 %v686
        %v815 = vunpack.c.l.b16 %v687
        %v816 = vunpack.c.l.b16 %v688
        %v817 = vunpack.c.l.b16 %v689
        %v818 = vunpack.c.l.b16 %v690
        %v819 = vunpack.c.l.b16 %v691
        %v820 = vunpack.c.l.b16 %v692
        %v821 = vunpack.c.l.b16 %v693
        %v822 = vunpack.c.l.b16 %v694
        %v823 = vunpack.c.l.b16 %v695
        %v824 = vunpack.c.l.b16 %v696
        %v825 = vunpack.c.l.b16 %v697
        %v826 = vpack.c.b16 %v763, %v762
        %v827 = vpack.c.b16 %v765, %v764
        %v828 = vpack.c.b16 %v767, %v766
        %v829 = vpack.c.b16 %v769, %v768
        %v830 = vpack.c.b16 %v771, %v770
        %v831 = vpack.c.b16 %v773, %v772
        %v832 = vpack.c.b16 %v775, %v774
        %v833 = vpack.c.b16 %v777, %v776
        %v834 = vpack.c.b16 %v779, %v778
        %v835 = vpack.c.b16 %v781, %v780
        %v836 = vpack.c.b16 %v783, %v782
        %v837 = vpack.c.b16 %v785, %v784
        %v838 = vpack.c.b16 %v787, %v786
        %v839 = vpack.c.b16 %v789, %v788
        %v840 = vpack.c.b16 %v791, %v790
        %v841 = vpack.c.b16 %v793, %v792
        %v842 = vpack.c.b16 %v795, %v794
        %v843 = vpack.c.b16 %v797, %v796
        %v844 = vpack.c.b16 %v799, %v798
        %v845 = vpack.c.b16 %v801, %v800
        %v846 = vpack.c.b16 %v803, %v802
        %v847 = vpack.c.b16 %v805, %v804
        %v848 = vpack.c.b16 %v807, %v806
        %v849 = vpack.c.b16 %v809, %v808
        %v850 = vpack.c.b16 %v811, %v810
        %v851 = vpack.c.b16 %v813, %v812
        %v852 = vpack.c.b16 %v815, %v814
        %v853 = vpack.c.b16 %v817, %v816
        %v854 = vpack.c.b16 %v819, %v818
        %v855 = vpack.c.b16 %v821, %v820
        %v856 = vpack.c.b16 %v823, %v822
        %v857 = vpack.c.b16 %v825, %v824
        %890 = vmatprep.subr.bf16.mxu0 0
        %891 = vmatpush1.bf16.msra.mxu0 %v826
        %892 = vmatprep.subr.bf16.mxu0 0
        %893 = vmatpush1.bf16.msra.mxu0 %v827
        %894 = vmatprep.subr.bf16.mxu0 0
        %895 = vmatpush1.bf16.msra.mxu0 %v828
        %896 = vmatprep.subr.bf16.mxu0 0
        %897 = vmatpush1.bf16.msra.mxu0 %v829
        %898 = vmatprep.subr.bf16.mxu0 0
        %899 = vmatpush1.bf16.msra.mxu0 %v830
        %900 = vmatprep.subr.bf16.mxu0 0
        %901 = vmatpush1.bf16.msra.mxu0 %v831
        %902 = vmatprep.subr.bf16.mxu0 0
        %903 = vmatpush1.bf16.msra.mxu0 %v832
        %904 = vmatprep.subr.bf16.mxu0 0
        %905 = vmatpush1.bf16.msra.mxu0 %v833
        %906 = vmatprep.subr.bf16.mxu0 0
        %907 = vmatpush1.bf16.msra.mxu0 %v834
        %908 = vmatprep.subr.bf16.mxu0 0
        %909 = vmatpush1.bf16.msra.mxu0 %v835
        %910 = vmatprep.subr.bf16.mxu0 0
        %911 = vmatpush1.bf16.msra.mxu0 %v836
        %912 = vmatprep.subr.bf16.mxu0 0
        %913 = vmatpush1.bf16.msra.mxu0 %v837
        %914 = vmatprep.subr.bf16.mxu0 0
        %915 = vmatpush1.bf16.msra.mxu0 %v838
        %916 = vmatprep.subr.bf16.mxu0 0
        %917 = vmatpush1.bf16.msra.mxu0 %v839
        %918 = vmatprep.subr.bf16.mxu0 0
        %919 = vmatpush1.bf16.msra.mxu0 %v840
        %920 = vmatprep.subr.bf16.mxu0 0
        %921 = vmatpush1.bf16.msra.mxu0 %v841
        %922 = vmatprep.mubr.bf16.mxu0 %v627
        %923 = vmatmul.mubr.bf16.gmra.mrb[0].mxu0 %v626
        %v924 = vpop.f32.mrb[0].mxu0
        %v925 = vadd.f32 1e-06, %v924
        %v926 = vpop.f32.mrb[0].mxu0
        %v927 = vpop.f32.mrb[0].mxu0
        %v928 = vadd.f32 1e-06, %v927
        %v929 = vpop.f32.mrb[0].mxu0
        %930 = vmatprep.mubr.bf16.mxu0 %v631
        %931 = vmatmul.mubr.bf16.gmra.mrb[0].mxu0 %v630
        %v932 = vpop.f32.mrb[0].mxu0
        %v933 = vadd.f32 1e-06, %v932
        %v934 = vpop.f32.mrb[0].mxu0
        %v935 = vpop.f32.mrb[0].mxu0
        %v936 = vpop.f32.mrb[0].mxu0
        %937 = vdwg.mxu0
        %938 = vmatprep.subr.bf16.mxu0 0
        %939 = vmatpush1.bf16.msra.mxu0 %v842
        %940 = vmatprep.subr.bf16.mxu0 0
        %941 = vmatpush1.bf16.msra.mxu0 %v843
        %942 = vmatprep.subr.bf16.mxu0 0
        %943 = vmatpush1.bf16.msra.mxu0 %v844
        %944 = vmatprep.subr.bf16.mxu0 0
        %945 = vmatpush1.bf16.msra.mxu0 %v845
        %946 = vmatprep.subr.bf16.mxu0 0
        %947 = vmatpush1.bf16.msra.mxu0 %v846
        %948 = vmatprep.subr.bf16.mxu0 0
        %949 = vmatpush1.bf16.msra.mxu0 %v847
        %950 = vmatprep.subr.bf16.mxu0 0
        %951 = vmatpush1.bf16.msra.mxu0 %v848
        %952 = vmatprep.subr.bf16.mxu0 0
        %953 = vmatpush1.bf16.msra.mxu0 %v849
        %954 = vmatprep.subr.bf16.mxu0 0
        %955 = vmatpush1.bf16.msra.mxu0 %v850
        %956 = vmatprep.subr.bf16.mxu0 0
        %957 = vmatpush1.bf16.msra.mxu0 %v851
        %958 = vmatprep.subr.bf16.mxu0 0
        %959 = vmatpush1.bf16.msra.mxu0 %v852
        %960 = vmatprep.subr.bf16.mxu0 0
        %961 = vmatpush1.bf16.msra.mxu0 %v853
        %962 = vmatprep.subr.bf16.mxu0 0
        %963 = vmatpush1.bf16.msra.mxu0 %v854
        %964 = vmatprep.subr.bf16.mxu0 0
        %965 = vmatpush1.bf16.msra.mxu0 %v855
        %966 = vmatprep.subr.bf16.mxu0 0
        %967 = vmatpush1.bf16.msra.mxu0 %v856
        %968 = vmatprep.subr.bf16.mxu0 0
        %969 = vmatpush1.bf16.msra.mxu0 %v857
        %970 = vmatprep.mubr.bf16.mxu0 %v629
        %971 = vmatmul.mubr.bf16.gmra.mrb[0].mxu0 %v628
        %v972 = vpop.f32.mrb[0].mxu0
        %v973 = vadd.f32 %v925, %v972
        %v974 = vpop.f32.mrb[0].mxu0
        %v975 = vpop.f32.mrb[0].mxu0
        %v976 = vadd.f32 %v928, %v975
        %v977 = vpop.f32.mrb[0].mxu0
        %978 = vmatprep.mubr.bf16.mxu0 %v633
        %979 = vmatmul.mubr.bf16.gmra.mrb[0].mxu0 %v632
        %v980 = vpop.f32.mrb[0].mxu0
        %v981 = vadd.f32 %v933, %v980
        %v982 = vpop.f32.mrb[0].mxu0
        %v983 = vpop.f32.mrb[0].mxu0
        %v984 = vpop.f32.mrb[0].mxu0
        %985 = vdwg.mxu0
        %v986 = vlog2.pop %v973
        %v987 = vmul.f32 %v986, 0.6931472
        %v988 = vlog2.pop %v976
        %v989 = vmul.f32 %v988, 0.6931472
        %v990 = vlog2.pop %v981
        %v991 = vmul.f32 %v990, 0.6931472
        %v992 = vld [vmem:[%s6] sm:$0xff]
        %v993 = vld [vmem:[%s6 + $0x8] sm:$0xff]
        %v994 = vld [vmem:[%s6 + $0x10] sm:$0xf]
        %v995 = vmul.f32 %v992, %v987
        %v996 = vmul.f32 %v993, %v989
        %v997 = vmul.f32 %v994, %v991
        %v998 = vadd.f32 %v995, %v996
        %vm999 = vcmask 1043456
        %v1000 = vsel %vm999, %v997, 0.0
        %v1001 = vadd.f32 %v998, %v1000
        %v1002 = vrot.slane %v1001, 4
        %v1003 = vadd.f32 %v1001, %v1002
        %v1004 = vrot.slane %v1003, 2
        %v1005 = vadd.f32 %v1003, %v1004
        %v1006 = vrot.slane %v1005, 1
        %v1007 = vadd.f32 %v1005, %v1006
        %s1008 = scalar_lea.vmem %s6, 24
        %v1009 = vld [vmem:[%s1008] sm:$0xff]
        %v1010 = vld [vmem:[%s1008 + $0x8] sm:$0xff]
        %v1011 = vld [vmem:[%s1008 + $0x10] sm:$0xf]
        %v1012 = vmul.f32 %v1009, %v987
        %v1013 = vmul.f32 %v1010, %v989
        %v1014 = vmul.f32 %v1011, %v991
        %v1015 = vadd.f32 %v1012, %v1013
        %v1016 = vsel %vm999, %v1014, 0.0
        %v1017 = vadd.f32 %v1015, %v1016
        %v1018 = vrot.slane %v1017, 4
        %v1019 = vadd.f32 %v1017, %v1018
        %v1020 = vrot.slane %v1019, 2
        %v1021 = vadd.f32 %v1019, %v1020
        %v1022 = vrot.slane %v1021, 1
        %v1023 = vadd.f32 %v1021, %v1022
        %s1024 = scalar_lea.vmem %s6, 48
        %v1025 = vld [vmem:[%s1024] sm:$0xff]
        %v1026 = vld [vmem:[%s1024 + $0x8] sm:$0xff]
        %v1027 = vld [vmem:[%s1024 + $0x10] sm:$0xf]
        %v1028 = vmul.f32 %v1025, %v987
        %v1029 = vmul.f32 %v1026, %v989
        %v1030 = vmul.f32 %v1027, %v991
        %v1031 = vadd.f32 %v1028, %v1029
        %v1032 = vsel %vm999, %v1030, 0.0
        %v1033 = vadd.f32 %v1031, %v1032
        %v1034 = vrot.slane %v1033, 4
        %v1035 = vadd.f32 %v1033, %v1034
        %v1036 = vrot.slane %v1035, 2
        %v1037 = vadd.f32 %v1035, %v1036
        %v1038 = vrot.slane %v1037, 1
        %v1039 = vadd.f32 %v1037, %v1038
        %s1040 = scalar_lea.vmem %s6, 72
        %v1041 = vld [vmem:[%s1040] sm:$0xff]
        %v1042 = vld [vmem:[%s1040 + $0x8] sm:$0xff]
        %v1043 = vld [vmem:[%s1040 + $0x10] sm:$0xf]
        %v1044 = vmul.f32 %v1041, %v987
        %v1045 = vmul.f32 %v1042, %v989
        %v1046 = vmul.f32 %v1043, %v991
        %v1047 = vadd.f32 %v1044, %v1045
        %v1048 = vsel %vm999, %v1046, 0.0
        %v1049 = vadd.f32 %v1047, %v1048
        %v1050 = vrot.slane %v1049, 4
        %v1051 = vadd.f32 %v1049, %v1050
        %v1052 = vrot.slane %v1051, 2
        %v1053 = vadd.f32 %v1051, %v1052
        %v1054 = vrot.slane %v1053, 1
        %v1055 = vadd.f32 %v1053, %v1054
        %vm1056 = vcmask 1040384
        %v1057 = vsel %vm1056, %v1007, %v1023
        %vm1058 = vcmask 1041408
        %v1059 = vsel %vm1058, %v1057, %v1039
        %vm1060 = vcmask 1042432
        %v1061 = vsel %vm1060, %v1059, %v1055
        %v1062 = vld [vmem:[#allocation5] sm:$0xff]
        %v1063 = vld [vmem:[#allocation5 + $0x8] sm:$0xff]
        %v1064 = vld [vmem:[#allocation5 + $0x10] sm:$0xff]
        %v1065 = vld [vmem:[#allocation5 + $0x18] sm:$0xff]
        %v1066 = vld [vmem:[#allocation5 + $0x20] sm:$0xff]
        %v1067 = vld [vmem:[#allocation5 + $0x28] sm:$0xff]
        %v1068 = vld [vmem:[#allocation5 + $0x30] sm:$0xff]
        %v1069 = vld [vmem:[#allocation5 + $0x38] sm:$0xff]
        %v1070 = vld [vmem:[#allocation5 + $0x40] sm:$0xff]
        %v1071 = vld [vmem:[#allocation5 + $0x48] sm:$0xff]
        %v1072 = vld [vmem:[#allocation5 + $0x50] sm:$0xff]
        %v1073 = vld [vmem:[#allocation5 + $0x58] sm:$0xff]
        %v1074 = vld [vmem:[#allocation5 + $0x60] sm:$0xff]
        %v1075 = vld [vmem:[#allocation5 + $0x68] sm:$0xff]
        %v1076 = vld [vmem:[#allocation5 + $0x70] sm:$0xff]
        %v1077 = vld [vmem:[#allocation5 + $0x78] sm:$0xff]
        %v1078 = vld [vmem:[%s8] sm:$0xf]
        %1080 = vset.pattern.permute.xlu0 0
        %1081 = vperm.xlu0 %1080, %v1078
        %v1082 = vpop.permute.xlu0 %1081
        %1084 = vmatprep.subr.mxu0 0.0
        %1085 = vmatpush1.msra.mxu0 %v1062
        %1086 = vmatprep.subr.mxu0 0.0
        %1087 = vmatpush1.msra.mxu0 %v1063
        %1088 = vmatprep.subr.mxu0 0.0
        %1089 = vmatpush1.msra.mxu0 %v1064
        %1090 = vmatprep.subr.mxu0 0.0
        %1091 = vmatpush1.msra.mxu0 %v1065
        %1092 = vmatprep.subr.mxu0 0.0
        %1093 = vmatpush1.msra.mxu0 %v1066
        %1094 = vmatprep.subr.mxu0 0.0
        %1095 = vmatpush1.msra.mxu0 %v1067
        %1096 = vmatprep.subr.mxu0 0.0
        %1097 = vmatpush1.msra.mxu0 %v1068
        %1098 = vmatprep.subr.mxu0 0.0
        %1099 = vmatpush1.msra.mxu0 %v1069
        %1100 = vmatprep.subr.mxu0 0.0
        %1101 = vmatpush1.msra.mxu0 %v1070
        %1102 = vmatprep.subr.mxu0 0.0
        %1103 = vmatpush1.msra.mxu0 %v1071
        %1104 = vmatprep.subr.mxu0 0.0
        %1105 = vmatpush1.msra.mxu0 %v1072
        %1106 = vmatprep.subr.mxu0 0.0
        %1107 = vmatpush1.msra.mxu0 %v1073
        %1108 = vmatprep.subr.mxu0 0.0
        %1109 = vmatpush1.msra.mxu0 %v1074
        %1110 = vmatprep.subr.mxu0 0.0
        %1111 = vmatpush1.msra.mxu0 %v1075
        %1112 = vmatprep.subr.mxu0 0.0
        %1113 = vmatpush1.msra.mxu0 %v1076
        %1114 = vmatprep.subr.mxu0 0.0
        %1115 = vmatpush1.msra.mxu0 %v1077
        %1116 = vmatprep.subr.mxu0 0.0
        %1117 = vmatpush1.msra.mxu0 0.0
        %1118 = vmatprep.subr.mxu0 0.0
        %1119 = vmatpush1.msra.mxu0 0.0
        %1120 = vmatprep.subr.mxu0 0.0
        %1121 = vmatpush1.msra.mxu0 0.0
        %1122 = vmatprep.subr.mxu0 0.0
        %1123 = vmatpush1.msra.mxu0 0.0
        %1124 = vmatprep.subr.mxu0 0.0
        %1125 = vmatpush1.msra.mxu0 0.0
        %1126 = vmatprep.subr.mxu0 0.0
        %1127 = vmatpush1.msra.mxu0 0.0
        %1128 = vmatprep.subr.mxu0 0.0
        %1129 = vmatpush1.msra.mxu0 0.0
        %1130 = vmatprep.subr.mxu0 0.0
        %1131 = vmatpush1.msra.mxu0 0.0
        %1132 = vmatprep.subr.mxu0 0.0
        %1133 = vmatpush1.msra.mxu0 0.0
        %1134 = vmatprep.subr.mxu0 0.0
        %1135 = vmatpush1.msra.mxu0 0.0
        %1136 = vmatprep.subr.mxu0 0.0
        %1137 = vmatpush1.msra.mxu0 0.0
        %1138 = vmatprep.subr.mxu0 0.0
        %1139 = vmatpush1.msra.mxu0 0.0
        %1140 = vmatprep.subr.mxu0 0.0
        %1141 = vmatpush1.msra.mxu0 0.0
        %1142 = vmatprep.subr.mxu0 0.0
        %1143 = vmatpush1.msra.mxu0 0.0
        %1144 = vmatprep.subr.mxu0 0.0
        %1145 = vmatpush1.msra.mxu0 0.0
        %1146 = vmatprep.subr.mxu0 0.0
        %1147 = vmatpush1.msra.mxu0 0.0
        %1148 = vmatprep.mubr.f32.mxu0 0.0
        %1149 = vmatmul.mubr.f32.gmra.mrb[0].mxu0 %v1061
        %v1150 = vpop.f32.mrb[0].mxu0
        %v1151 = vadd.f32 %v1082, %v1150
        %v1152 = vpop.f32.mrb[0].mxu0
        %1153 = vdwg.mxu0
        %1154 = vst [vmem:[%s365] sm:$0xf] %v1151
        %s1155 = sand.u32 %s229, 1
        %s1156 = scalar_lea.sflag [#allocation4], %s1155
        %s1157 = sand.u32 %s229, 1
        %s1158 = smul.addr %s1157, 4
        %s1159 = scalar_lea.vmem [#allocation7], %s1158
        // Predicated region
        $region65: #{tpu_custom_call.1} parent=55 // pred_check
          %p1160 = pneg %p239
        $region66: #{tpu_custom_call.1} parent=55 // pred_check_branch
          %1162 = sbr.rel (%p1160) target = $region68
        $region67: #{tpu_custom_call.1} parent=55 // pred_region
          %s1164 = ssub.s32 64, 64
          %1165 = vsyncadd %s1156, %s1164
          %s1166 = smul.addr %s27, 64
          %s1167 = scalar_lea.hbm %s9, %s1166
          %s1169 = sshll.u32 %s1159, 4
          %s1170 = int_to_ptr.vmem [resolvable:$true] %s1169
          %1172 = dma.vmem_to_hbm [thread:$0]  %s1170, 64, %s1167, %s1156
        $region68: #{tpu_custom_call.1} parent=55 // pred_fallthru
          _
      $region56: #{tpu_custom_call.1} parent=5 // pred_fallthru
        _
      %p1173 = scmp.le.s32.totalorder 2, %s22
      // Predicated region
      $region69: #{tpu_custom_call.1} parent=5 // pred_check
        %p1174 = pneg %p1173
      $region70: #{tpu_custom_call.1} parent=5 // pred_check_branch
        %1176 = sbr.rel (%p1174) target = $region72
      $region71: #{tpu_custom_call.1} parent=5 // pred_region
        %s1177 = ssub.s32 %s22, 2
        // Predicated region
        $region73: #{tpu_custom_call.1} parent=71 // pred_check
          %p1178 = pneg %p245
        $region74: #{tpu_custom_call.1} parent=71 // pred_check_branch
          %1180 = sbr.rel (%p1178) target = $region76
        $region75: #{tpu_custom_call.1} parent=71 // pred_region
          %s1181 = sand.u32 %s230, 1
          %s1182 = scalar_lea.sflag [#allocation4], %s1181
          %s1183 = sand.u32 %s230, 1
          %s1184 = smul.addr %s1183, 4
          %s1185 = scalar_lea.vmem [#allocation7], %s1184
          %1186 = dma.done %s1182, 64
        $region76: #{tpu_custom_call.1} parent=71 // pred_fallthru
          _
      $region72: #{tpu_custom_call.1} parent=5 // pred_fallthru
        _
    $region6: #{tpu_custom_call.1} parent=1 // loop_footer
      %s26 = sadd.s32 1, %s22
    $region7: #{tpu_custom_call.1} parent=1 // loop_footer_branch
      %21 = sbr.rel target = $region3
    $region8: #{tpu_custom_call.1} parent=1 // loop_exit
      _
    %1187 = vsyncpa [#allocation3], 1
    %s1188 = scalar_lea.sflag [#allocation3], 1
    %1189 = vsyncpa %s1188, 1
    %1190 = vsyncpa [#allocation6], 1
    %1191 = vsyncpa [#allocation4], 1
    %s1192 = scalar_lea.sflag [#allocation4], 1
    %1193 = vsyncpa %s1192, 1

</llo_original>
